<compile_context>
chip_gen: v7x
topology: tpu7x:2x2x1
jax: 0.10.0
libtpu: 0.0.40
codegen_flags: <defaults>
</compile_context>

<pallas_src>
import functools

import jax
import jax.numpy as jnp
from jax.experimental import pallas as pl
from jax.experimental.pallas import tpu as pltpu

T_TEMP = 10.0
LAMBDA_HARD = 0.3
LAMBDA_CAM = 0.2
P_CAM = 28 * 28          # 784 pixels per CAM
_LANES = 128
_VMEM_LIMIT = 40 * 1024 * 1024   # fits TB<=2048 double-buffered CAM tiles on all gens


def _round_up(x, m):
    return (x + m - 1) // m * m


def _cam_target_loss_kernel(logits_ref, targets_ref, t_ref, scam_ref, tcam_ref,
                            out_ref, *, true_b, inv_b, inv_bp):
    """One batch tile.

    logits_ref, targets_ref : (C, TB)   class-on-sublane, batch-on-lane
    t_ref                   : (1, TB)   int32 labels
    scam_ref, tcam_ref      : (TB, 784) CAMs (any float dtype; cast to f32 here)
    out_ref                 : (1, 8, 128) lane-dense partial tile; the weighted
                              per-block partial loss is written at [0, 0, 0].
    """
    C, TB = logits_ref.shape
    ragged = (true_b % TB) != 0          # trace-time: mask code emitted only if needed
    base = pl.program_id(0) * TB

    inv_t = 1.0 / T_TEMP
    logits = logits_ref[...].astype(jnp.float32) * inv_t
    targets = targets_ref[...].astype(jnp.float32) * inv_t

    # log_softmax over classes (sublane axis) for student and teacher.
    lmax = jnp.max(logits, axis=0, keepdims=True)
    lsh = logits - lmax
    log_q = lsh - jnp.log(jnp.sum(jnp.exp(lsh), axis=0, keepdims=True))

    tmax = jnp.max(targets, axis=0, keepdims=True)
    tsh = targets - tmax
    log_p = tsh - jnp.log(jnp.sum(jnp.exp(tsh), axis=0, keepdims=True))
    p = jnp.exp(log_p)

    # One-hot of labels along the class (sublane) axis.
    labels = t_ref[...]                                           # (1, TB) int32
    class_iota = jax.lax.broadcasted_iota(jnp.int32, (C, TB), 0)
    onehot = (class_iota == labels).astype(jnp.float32)

    # Fused KL (batchmean) + CE -> per-item column sums over the class axis.
    w_soft = 1.0 - LAMBDA_HARD - LAMBDA_CAM
    fused = w_soft * (p * (log_p - log_q)) - LAMBDA_HARD * (onehot * log_q)
    col = jnp.sum(fused, axis=0, keepdims=True)                   # (1, TB)
    if ragged:
        lane = jax.lax.broadcasted_iota(jnp.int32, (1, TB), 1)
        col = jnp.where(base + lane < true_b, col, 0.0)           # drop OOB items
    klce = jnp.sum(col) * inv_b

    # CAM MSE over the (TB, 784) tile; squared error accumulated in f32.
    diff = scam_ref[...].astype(jnp.float32) - tcam_ref[...].astype(jnp.float32)
    sq = diff * diff
    if ragged:
        row = jax.lax.broadcasted_iota(jnp.int32, (TB, 1), 0)
        sq = jnp.where(base + row < true_b, sq, 0.0)              # drop OOB rows
    cam = jnp.sum(sq) * (LAMBDA_CAM * inv_bp)

    total = klce + cam
    sub = jax.lax.broadcasted_iota(jnp.int32, (1, 8, _LANES), 1)
    lane = jax.lax.broadcasted_iota(jnp.int32, (1, 8, _LANES), 2)
    out_ref[...] = jnp.where((sub == 0) & (lane == 0), total, 0.0)    # unmasked vst


def cam_target_loss(batch_size, logits, targets, student_cam, teacher_cam, t,
                    *, block_b=1024):
    """Pallas implementation of CAMTargetLoss.forward -> scalar loss."""
    B = int(batch_size)
    C = logits.shape[1]
    assert block_b % _LANES == 0, "block_b must be a multiple of 128"
    assert student_cam.size == B * P_CAM and teacher_cam.size == B * P_CAM

    # ---- batch tile selection -------------------------------------------------
    # Small B: one full-extent block (no divisibility constraints).  Larger B:
    # TB is a multiple of 128 (lane constraint of the transposed logits block),
    # capped at ceil(B/2) rounded up so the grid keeps >= 2 "parallel" blocks
    # and can shard across both TensorCores on v7x.
    if B <= _LANES:
        TB = B
    else:
        TB = min(block_b, _round_up(pl.cdiv(B, 2), _LANES))
    num_blocks = pl.cdiv(B, TB)

    # ---- single-op relayouts only; no padding, no extra HBM pass over CAMs ----
    logits_t = jnp.transpose(logits)                        # (C, B), tiny
    targets_t = jnp.transpose(targets)                      # (C, B), tiny
    t_row = t.astype(jnp.int32).reshape(1, B)                # (1, B)
    scam = student_cam.reshape(B, P_CAM)                     # f32 or bf16, one reshape
    tcam = teacher_cam.reshape(B, P_CAM)

    kernel = functools.partial(_cam_target_loss_kernel, true_b=B,
                               inv_b=1.0 / B, inv_bp=1.0 / (B * P_CAM))

    partials = pl.pallas_call(
        kernel,
        out_shape=jax.ShapeDtypeStruct((num_blocks, 8, _LANES), jnp.float32),
        grid_spec=pltpu.PrefetchScalarGridSpec(
            num_scalar_prefetch=0,
            grid=(num_blocks,),
            in_specs=[
                pl.BlockSpec((C, TB), lambda i: (0, i)),
                pl.BlockSpec((C, TB), lambda i: (0, i)),
                pl.BlockSpec((1, TB), lambda i: (0, i)),
                pl.BlockSpec((TB, P_CAM), lambda i: (i, 0)),
                pl.BlockSpec((TB, P_CAM), lambda i: (i, 0)),
            ],
            out_specs=pl.BlockSpec((1, 8, _LANES), lambda i: (i, 0, 0)),
        ),
        compiler_params=pltpu.CompilerParams(
            dimension_semantics=("parallel",),      # independent per-block partials
            vmem_limit_bytes=_VMEM_LIMIT),
    )(logits_t, targets_t, t_row, scam, tcam)

    # Tiny final reduce (num_blocks * 4 KiB) in plain XLA.
    return jnp.sum(partials)


def _reference(batch_size, logits, targets, student_cam, teacher_cam, t):
    logits = logits.astype(jnp.float32) / T_TEMP
    targets = targets.astype(jnp.float32) / T_TEMP
    log_q = jax.nn.log_softmax(logits, axis=1)
    log_p = jax.nn.log_softmax(targets, axis=1)
    p = jnp.exp(log_p)
    soft = jnp.sum(p * (log_p - log_q)) / batch_size
    hard = -jnp.mean(jnp.take_along_axis(log_q, t.reshape(-1, 1), axis=1))
    scam = student_cam.astype(jnp.float32).reshape(batch_size, -1)
    tcam = teacher_cam.astype(jnp.float32).reshape(batch_size, -1)
    cam = jnp.mean((scam - tcam) ** 2)
    return ((1.0 - LAMBDA_HARD - LAMBDA_CAM) * soft
            + LAMBDA_HARD * hard + LAMBDA_CAM * cam)


if __name__ == "__main__":
    # --- small test (B=2): single full-extent block ---------------------------
    k1, k2, k3, k4, k5 = jax.random.split(jax.random.PRNGKey(0), 5)
    B, C = 2, 10
    logits = jax.random.normal(k1, (B, C), dtype=jnp.float32)
    targets = jax.random.normal(k2, (B, C), dtype=jnp.float32)
    student_cam = jax.random.normal(k3, (B, 1, 28, 28), dtype=jnp.float32)
    teacher_cam = jax.random.normal(k4, (B, 1, 28, 28), dtype=jnp.float32)
    t = jax.random.randint(k5, (B,), 0, C, dtype=jnp.int32)

    loss = jax.block_until_ready(
        cam_target_loss(B, logits, targets, student_cam, teacher_cam, t))
    ref = _reference(B, logits, targets, student_cam, teacher_cam, t)
    assert jnp.allclose(loss, ref, rtol=1e-5, atol=1e-5), (loss, ref)

    # --- multi-block test (B=130): exercises grid + ragged last block ---------
    k1, k2, k3, k4, k5 = jax.random.split(jax.random.PRNGKey(1), 5)
    B2, C2 = 130, 10
    logits2 = jax.random.normal(k1, (B2, C2), dtype=jnp.float32)
    targets2 = jax.random.normal(k2, (B2, C2), dtype=jnp.float32)
    scam2 = jax.random.normal(k3, (B2, 1, 28, 28), dtype=jnp.float32)
    tcam2 = jax.random.normal(k4, (B2, 1, 28, 28), dtype=jnp.float32)
    t2 = jax.random.randint(k5, (B2,), 0, C2, dtype=jnp.int32)

    loss2 = jax.block_until_ready(
        cam_target_loss(B2, logits2, targets2, scam2, tcam2, t2))
    ref2 = _reference(B2, logits2, targets2, scam2, tcam2, t2)
    assert jnp.allclose(loss2, ref2, rtol=1e-4, atol=1e-4), (loss2, ref2)

    # --- bf16 CAM contract (halves CAM HBM traffic; accumulation stays f32) ---
    scam_bf = student_cam.astype(jnp.bfloat16)
    tcam_bf = teacher_cam.astype(jnp.bfloat16)
    loss3 = jax.block_until_ready(
        cam_target_loss(B, logits, targets, scam_bf, tcam_bf, t))
    ref3 = _reference(B, logits, targets, scam_bf, tcam_bf, t)
    assert jnp.allclose(loss3, ref3, rtol=1e-4, atol=1e-4), (loss3, ref3)

    print("KERNEL_OK")
</pallas_src>

<mosaic_0001>
module attributes {stable_mosaic.version = 11 : i64} {
  func.func @_cam_target_loss_kernel(%arg0: i32, %arg1: memref<10x2xf32, #tpu.memory_space<vmem>>, %arg2: memref<10x2xf32, #tpu.memory_space<vmem>>, %arg3: memref<1x2xi32, #tpu.memory_space<vmem>>, %arg4: memref<2x784xf32, #tpu.memory_space<vmem>>, %arg5: memref<2x784xf32, #tpu.memory_space<vmem>>, %arg6: memref<1x8x128xf32, #tpu.memory_space<vmem>>) attributes {dimension_semantics = [#tpu.dimension_semantics<parallel>], iteration_bounds = array<i64: 1>, scalar_prefetch = 0 : i64, scratch_operands = 0 : i64, tpu.core_type = #tpu.core_type<tc>, window_params = [{transform_indices = @transform_0, window_bounds = array<i64: 10, 2>}, {transform_indices = @transform_1, window_bounds = array<i64: 10, 2>}, {transform_indices = @transform_2, window_bounds = array<i64: 1, 2>}, {transform_indices = @transform_3, window_bounds = array<i64: 2, 784>}, {transform_indices = @transform_4, window_bounds = array<i64: 2, 784>}, {transform_indices = @transform_5, window_bounds = array<i64: 1, 8, 128>}]} {
    %c0 = arith.constant 0 : index
    %c0_0 = arith.constant 0 : index
    %0 = vector.load %arg1[%c0, %c0_0] : memref<10x2xf32, #tpu.memory_space<vmem>>, vector<10x2xf32>
    %cst = arith.constant 1.000000e-01 : f32
    %1 = vector.broadcast %cst : f32 to vector<10x2xf32>
    %2 = arith.mulf %0, %1 : vector<10x2xf32>
    %c0_1 = arith.constant 0 : index
    %c0_2 = arith.constant 0 : index
    %3 = vector.load %arg2[%c0_1, %c0_2] : memref<10x2xf32, #tpu.memory_space<vmem>>, vector<10x2xf32>
    %cst_3 = arith.constant 1.000000e-01 : f32
    %4 = vector.broadcast %cst_3 : f32 to vector<10x2xf32>
    %5 = arith.mulf %3, %4 : vector<10x2xf32>
    %cst_4 = arith.constant dense<0xFF800000> : vector<2xf32>
    %6 = vector.multi_reduction <maximumf>, %2, %cst_4 [0] : vector<10x2xf32> to vector<2xf32>
    %7 = vector.shape_cast %6 : vector<2xf32> to vector<1x2xf32>
    %8 = vector.broadcast %7 : vector<1x2xf32> to vector<10x2xf32>
    %9 = arith.subf %2, %8 : vector<10x2xf32>
    %10 = math.exp %9 : vector<10x2xf32>
    %cst_5 = arith.constant dense<0.000000e+00> : vector<2xf32>
    %11 = vector.multi_reduction <add>, %10, %cst_5 [0] : vector<10x2xf32> to vector<2xf32>
    %12 = vector.shape_cast %11 : vector<2xf32> to vector<1x2xf32>
    %13 = math.log %12 : vector<1x2xf32>
    %14 = vector.broadcast %13 : vector<1x2xf32> to vector<10x2xf32>
    %15 = arith.subf %9, %14 : vector<10x2xf32>
    %cst_6 = arith.constant dense<0xFF800000> : vector<2xf32>
    %16 = vector.multi_reduction <maximumf>, %5, %cst_6 [0] : vector<10x2xf32> to vector<2xf32>
    %17 = vector.shape_cast %16 : vector<2xf32> to vector<1x2xf32>
    %18 = vector.broadcast %17 : vector<1x2xf32> to vector<10x2xf32>
    %19 = arith.subf %5, %18 : vector<10x2xf32>
    %20 = math.exp %19 : vector<10x2xf32>
    %cst_7 = arith.constant dense<0.000000e+00> : vector<2xf32>
    %21 = vector.multi_reduction <add>, %20, %cst_7 [0] : vector<10x2xf32> to vector<2xf32>
    %22 = vector.shape_cast %21 : vector<2xf32> to vector<1x2xf32>
    %23 = math.log %22 : vector<1x2xf32>
    %24 = vector.broadcast %23 : vector<1x2xf32> to vector<10x2xf32>
    %25 = arith.subf %19, %24 : vector<10x2xf32>
    %26 = math.exp %25 : vector<10x2xf32>
    %c0_8 = arith.constant 0 : index
    %c0_9 = arith.constant 0 : index
    %27 = vector.load %arg3[%c0_8, %c0_9] : memref<1x2xi32, #tpu.memory_space<vmem>>, vector<1x2xi32>
    %28 = tpu.iota {dimensions = array<i32: 0>} : vector<10x2xi32>
    %29 = vector.broadcast %27 : vector<1x2xi32> to vector<10x2xi32>
    %30 = arith.cmpi eq, %28, %29 : vector<10x2xi32>
    %31 = arith.extui %30 : vector<10x2xi1> to vector<10x2xi32>
    %32 = arith.sitofp %31 : vector<10x2xi32> to vector<10x2xf32>
    %33 = arith.subf %25, %15 : vector<10x2xf32>
    %34 = arith.mulf %26, %33 : vector<10x2xf32>
    %cst_10 = arith.constant 5.000000e-01 : f32
    %35 = vector.broadcast %cst_10 : f32 to vector<10x2xf32>
    %36 = arith.mulf %35, %34 : vector<10x2xf32>
    %37 = arith.mulf %32, %15 : vector<10x2xf32>
    %cst_11 = arith.constant 3.000000e-01 : f32
    %38 = vector.broadcast %cst_11 : f32 to vector<10x2xf32>
    %39 = arith.mulf %38, %37 : vector<10x2xf32>
    %40 = arith.subf %36, %39 : vector<10x2xf32>
    %cst_12 = arith.constant dense<0.000000e+00> : vector<2xf32>
    %41 = vector.multi_reduction <add>, %40, %cst_12 [0] : vector<10x2xf32> to vector<2xf32>
    %42 = vector.shape_cast %41 : vector<2xf32> to vector<1x2xf32>
    %43 = vector.shape_cast %42 : vector<1x2xf32> to vector<1x1x2xf32>
    %cst_13 = arith.constant dense<0.000000e+00> : vector<1xf32>
    %44 = vector.multi_reduction <add>, %43, %cst_13 [1, 2] : vector<1x1x2xf32> to vector<1xf32>
    %45 = vector.shape_cast %44 : vector<1xf32> to vector<1x1x1xf32>
    %46 = vector.extract %45[0, 0, 0] : f32 from vector<1x1x1xf32>
    %cst_14 = arith.constant 5.000000e-01 : f32
    %47 = arith.mulf %46, %cst_14 : f32
    %c0_15 = arith.constant 0 : index
    %c0_16 = arith.constant 0 : index
    %48 = vector.load %arg4[%c0_15, %c0_16] : memref<2x784xf32, #tpu.memory_space<vmem>>, vector<2x784xf32>
    %c0_17 = arith.constant 0 : index
    %c0_18 = arith.constant 0 : index
    %49 = vector.load %arg5[%c0_17, %c0_18] : memref<2x784xf32, #tpu.memory_space<vmem>>, vector<2x784xf32>
    %50 = arith.subf %48, %49 : vector<2x784xf32>
    %51 = arith.mulf %50, %50 : vector<2x784xf32>
    %52 = vector.shape_cast %51 : vector<2x784xf32> to vector<1x2x784xf32>
    %cst_19 = arith.constant dense<0.000000e+00> : vector<1xf32>
    %53 = vector.multi_reduction <add>, %52, %cst_19 [1, 2] : vector<1x2x784xf32> to vector<1xf32>
    %54 = vector.shape_cast %53 : vector<1xf32> to vector<1x1x1xf32>
    %55 = vector.extract %54[0, 0, 0] : f32 from vector<1x1x1xf32>
    %cst_20 = arith.constant 1.27551015E-4 : f32
    %56 = arith.mulf %55, %cst_20 : f32
    %57 = arith.addf %47, %56 : f32
    %58 = tpu.iota {dimensions = array<i32: 1>} : vector<1x8x128xi32>
    %59 = tpu.iota {dimensions = array<i32: 2>} : vector<1x8x128xi32>
    %c0_i32 = arith.constant 0 : i32
    %60 = vector.broadcast %c0_i32 : i32 to vector<1x8x128xi32>
    %61 = arith.cmpi eq, %58, %60 : vector<1x8x128xi32>
    %c0_i32_21 = arith.constant 0 : i32
    %62 = vector.broadcast %c0_i32_21 : i32 to vector<1x8x128xi32>
    %63 = arith.cmpi eq, %59, %62 : vector<1x8x128xi32>
    %64 = arith.andi %61, %63 : vector<1x8x128xi1>
    %cst_22 = arith.constant 0.000000e+00 : f32
    %65 = vector.broadcast %57 : f32 to vector<1x8x128xf32>
    %66 = vector.broadcast %cst_22 : f32 to vector<1x8x128xf32>
    %67 = arith.select %64, %65, %66 : vector<1x8x128xi1>, vector<1x8x128xf32>
    %c0_23 = arith.constant 0 : index
    %c0_24 = arith.constant 0 : index
    %c0_25 = arith.constant 0 : index
    %68 = vector.load %arg6[%c0_23, %c0_24, %c0_25] : memref<1x8x128xf32, #tpu.memory_space<vmem>>, vector<1x8x128xf32>
    tpu.vector_store %arg6[%c0_23, %c0_24, %c0_25], %67 {strides = array<i32>} : memref<1x8x128xf32, #tpu.memory_space<vmem>>, vector<1x8x128xf32>,
    return
  }
  func.func @transform_0(%arg0: i32) -> (i32, i32) {
    %c0_i32 = arith.constant 0 : i32
    %c0_i32_0 = arith.constant 0 : i32
    return %c0_i32, %arg0 : i32, i32
  }
  func.func @transform_1(%arg0: i32) -> (i32, i32) {
    %c0_i32 = arith.constant 0 : i32
    %c0_i32_0 = arith.constant 0 : i32
    return %c0_i32, %arg0 : i32, i32
  }
  func.func @transform_2(%arg0: i32) -> (i32, i32) {
    %c0_i32 = arith.constant 0 : i32
    %c0_i32_0 = arith.constant 0 : i32
    return %c0_i32, %arg0 : i32, i32
  }
  func.func @transform_3(%arg0: i32) -> (i32, i32) {
    %c0_i32 = arith.constant 0 : i32
    %c0_i32_0 = arith.constant 0 : i32
    return %arg0, %c0_i32 : i32, i32
  }
  func.func @transform_4(%arg0: i32) -> (i32, i32) {
    %c0_i32 = arith.constant 0 : i32
    %c0_i32_0 = arith.constant 0 : i32
    return %arg0, %c0_i32 : i32, i32
  }
  func.func @transform_5(%arg0: i32) -> (i32, i32, i32) {
    %c0_i32 = arith.constant 0 : i32
    %c0_i32_0 = arith.constant 0 : i32
    %c0_i32_1 = arith.constant 0 : i32
    return %arg0, %c0_i32, %c0_i32_0 : i32, i32, i32
  }
}

</mosaic_0001>

<llo_original>
// kernel: tpu_custom_call.1
$region0: #{tpu_custom_call.1}
  #allocation0 [shape = 'u32[]', space=smem, size = 0x4, offset = 0x4, fixed_abs, tag = 'smem constant byte address 0x4 - core index']
  #allocation1 [shape = 'u32[144,128]{1,0:T(1,128)}', space=vmem, size = 0x12000, scoped, tag = 'internal scratch']
  %s0 = inlined_call_operand.vmem [shape: f32[10,2], index: 0, kind: input, shape index: {}]
  %s1 = inlined_call_operand.vmem [shape: f32[10,2], index: 1, kind: input, shape index: {}]
  %s2 = inlined_call_operand.vmem [shape: s32[1,2], index: 2, kind: input, shape index: {}]
  %s3 = inlined_call_operand.vmem [shape: f32[2,784], index: 3, kind: input, shape index: {}]
  %s4 = inlined_call_operand.vmem [shape: f32[2,784], index: 4, kind: input, shape index: {}]
  %s5 = inlined_call_operand.hbm [shape: f32[1,8,128], index: 5, kind: output, shape index: {}]
  %s6 = sld [smem:[#allocation0]]
  $region30: #{tpu_custom_call.1} parent=0
    _
  %s8 = ssub.s32 1, %s6
  %s9 = scalar_select 0, %s8, %s6
  $region1: #{tpu_custom_call.1} parent=0
    #allocation2 [shape = 'u8[4096]{0}', space=vmem, size = 0x1000, scoped, tag = 'output window, operand 0, single buffered']
    #allocation3 [shape = 's32[1]{0}', space=sflag, size = 0x4, scoped, tag = 'scoped memory for tpu_custom_call.1']
    %10 = vsyncpa [#allocation3], 0
    // Predicated region
    $region2: #{tpu_custom_call.1} parent=1 // pred_check
      _
    $region3: #{tpu_custom_call.1} parent=1 // pred_check_branch
      %12 = sbr.rel (0) target = $region5
    $region4: #{tpu_custom_call.1} parent=1 // pred_region
      _
    $region5: #{tpu_custom_call.1} parent=1 // pred_fallthru
      _
    // Predicated region
    $region6: #{tpu_custom_call.1} parent=1 // pred_check
      _
    $region7: #{tpu_custom_call.1} parent=1 // pred_check_branch
      %14 = sbr.rel (0) target = $region9
    $region8: #{tpu_custom_call.1} parent=1 // pred_region
      _
    $region9: #{tpu_custom_call.1} parent=1 // pred_fallthru
      _
    // Predicated region
    $region10: #{tpu_custom_call.1} parent=1 // pred_check
      _
    $region11: #{tpu_custom_call.1} parent=1 // pred_check_branch
      %16 = sbr.rel (0) target = $region13
    $region12: #{tpu_custom_call.1} parent=1 // pred_region
      _
    $region13: #{tpu_custom_call.1} parent=1 // pred_fallthru
      _
    // Predicated region
    $region14: #{tpu_custom_call.1} parent=1 // pred_check
      _
    $region15: #{tpu_custom_call.1} parent=1 // pred_check_branch
      %18 = sbr.rel (0) target = $region17
    $region16: #{tpu_custom_call.1} parent=1 // pred_region
      _
    $region17: #{tpu_custom_call.1} parent=1 // pred_fallthru
      _
    // Predicated region
    $region18: #{tpu_custom_call.1} parent=1 // pred_check
      _
    $region19: #{tpu_custom_call.1} parent=1 // pred_check_branch
      %20 = sbr.rel (0) target = $region21
    $region20: #{tpu_custom_call.1} parent=1 // pred_region
      _
    $region21: #{tpu_custom_call.1} parent=1 // pred_fallthru
      _
    %v21 = vld [vmem:[%s0] sm:$0xff]
    %v22 = vld [vmem:[%s0 + $0x8] sm:$0x3]
    %v23 = vmul.f32 %v21, 0.1
    %v24 = vmul.f32 %v22, 0.1
    %v25 = vld [vmem:[%s1] sm:$0xff]
    %v26 = vld [vmem:[%s1 + $0x8] sm:$0x3]
    %v27 = vmul.f32 %v25, 0.1
    %v28 = vmul.f32 %v26, 0.1
    %vm29 = vcmask 15360
    %v30 = vsel %vm29, %v23, -inf
    %vm31 = vcmask 9216
    %v32 = vsel %vm31, %v24, -inf
    %v33 = vmax.f32 %v30, %v32
    %v34 = vrot.slane %v33, 4
    %v35 = vmax.f32 %v33, %v34
    %v36 = vrot.slane %v35, 2
    %v37 = vmax.f32 %v35, %v36
    %v38 = vrot.slane %v37, 1
    %v39 = vmax.f32 %v37, %v38
    %v40 = vsub.f32 %v23, %v39
    %v41 = vsub.f32 %v24, %v39
    %v42 = vmul.f32 %v40, 1.442695
    %v43 = vpow.pop %v42
    %v44 = vmul.f32 %v41, 1.442695
    %v45 = vpow.pop %v44
    %v46 = vsel %vm29, %v43, 0.0
    %v47 = vsel %vm31, %v45, 0.0
    %v48 = vadd.f32 %v46, %v47
    %v49 = vrot.slane %v48, 4
    %v50 = vadd.f32 %v48, %v49
    %v51 = vrot.slane %v50, 2
    %v52 = vadd.f32 %v50, %v51
    %v53 = vrot.slane %v52, 1
    %v54 = vadd.f32 %v52, %v53
    %v55 = vlog2.pop %v54
    %v56 = vmul.f32 %v55, 0.6931472
    %v57 = vsub.f32 %v40, %v56
    %v58 = vsub.f32 %v41, %v56
    %v59 = vsel %vm29, %v27, -inf
    %v60 = vsel %vm31, %v28, -inf
    %v61 = vmax.f32 %v59, %v60
    %v62 = vrot.slane %v61, 4
    %v63 = vmax.f32 %v61, %v62
    %v64 = vrot.slane %v63, 2
    %v65 = vmax.f32 %v63, %v64
    %v66 = vrot.slane %v65, 1
    %v67 = vmax.f32 %v65, %v66
    %v68 = vsub.f32 %v27, %v67
    %v69 = vsub.f32 %v28, %v67
    %v70 = vmul.f32 %v68, 1.442695
    %v71 = vpow.pop %v70
    %v72 = vmul.f32 %v69, 1.442695
    %v73 = vpow.pop %v72
    %v74 = vsel %vm29, %v71, 0.0
    %v75 = vsel %vm31, %v73, 0.0
    %v76 = vadd.f32 %v74, %v75
    %v77 = vrot.slane %v76, 4
    %v78 = vadd.f32 %v76, %v77
    %v79 = vrot.slane %v78, 2
    %v80 = vadd.f32 %v78, %v79
    %v81 = vrot.slane %v80, 1
    %v82 = vadd.f32 %v80, %v81
    %v83 = vlog2.pop %v82
    %v84 = vmul.f32 %v83, 0.6931472
    %v85 = vsub.f32 %v68, %v84
    %v86 = vsub.f32 %v69, %v84
    %v87 = vmul.f32 %v85, 1.442695
    %v88 = vpow.pop %v87
    %v89 = vmul.f32 %v86, 1.442695
    %v90 = vpow.pop %v89
    %v91 = vld [vmem:[%s2] sm:$0x1]
    %v92 = vlaneseq
    %v93 = vshrl.u32 %v92, 7
    %v94 = vadd.s32 %v93, 8
    %v95 = vlaneseq
    %v96 = vshrl.u32 %v95, 7
    %v97 = vsub.s32 0, %v96
    %v98 = vrot.slane %v91, %v97
    %vm99 = vcmp.eq.s32.totalorder %v93, %v98
    %vm100 = vcmp.eq.s32.totalorder %v94, %v98
    %v101 = vsel %vm99, 1, 0
    %v102 = vsel %vm100, 1, 0
    %v103 = vcvt.s32.f32 %v101
    %v104 = vcvt.s32.f32 %v102
    %v105 = vsub.f32 %v85, %v57
    %v106 = vsub.f32 %v86, %v58
    %v107 = vmul.f32 %v88, %v105
    %v108 = vmul.f32 %v90, %v106
    %v109 = vmul.f32 %v107, 0.5
    %v110 = vmul.f32 %v108, 0.5
    %v111 = vmul.f32 %v103, %v57
    %v112 = vmul.f32 %v104, %v58
    %v113 = vmul.f32 %v111, 0.3
    %v114 = vmul.f32 %v112, 0.3
    %v115 = vsub.f32 %v109, %v113
    %v116 = vsub.f32 %v110, %v114
    %v117 = vsel %vm29, %v115, 0.0
    %v118 = vsel %vm31, %v116, 0.0
    %v119 = vadd.f32 %v117, %v118
    %v120 = vrot.slane %v119, 4
    %v121 = vadd.f32 %v119, %v120
    %v122 = vrot.slane %v121, 2
    %v123 = vadd.f32 %v121, %v122
    %v124 = vrot.slane %v123, 1
    %v125 = vadd.f32 %v123, %v124
    %vm126 = vcmask 8192
    %v127 = vsel %vm126, %v125, 0.0
    %128 = vadd.xlane.f32.xlu0 %v127
    %v129 = vpop.xlane.xlu0 %128
    %v130 = vrot.slane %v129, 4
    %v131 = vadd.f32 %v129, %v130
    %v132 = vrot.slane %v131, 2
    %v133 = vadd.f32 %v131, %v132
    %v134 = vrot.slane %v133, 1
    %v135 = vadd.f32 %v133, %v134
    %s136 = vtos %v135
    %s137 = smul.f32 %s136, 0.5
    %v138 = vld [vmem:[%s3] sm:$0xff]
    %v139 = vld [vmem:[%s3 + $0x8] sm:$0x3f]
    %v140 = vld [vmem:[%s4] sm:$0xff]
    %v141 = vld [vmem:[%s4 + $0x8] sm:$0x3f]
    %v142 = vsub.f32 %v138, %v140
    %v143 = vsub.f32 %v139, %v141
    %v144 = vmul.f32 %v142, %v142
    %v145 = vmul.f32 %v143, %v143
    %v148 = vcombine.high %v144, %v144
    %v150 = vunpack.c.l.s4 1983009808
    %v151 = vunpack.c.0.s8 %v150
    %v152 = vlaneseq
    %v153 = vshrl.u32 %v152, 7
    %v154 = vsub.s32 %v151, %v153
    %v155 = vrot.slane %v144, %v154
    %v157 = vunpack.c.l.s4 1983009808
    %v158 = vunpack.c.0.s8 %v157
    %v159 = vlaneseq
    %v160 = vshrl.u32 %v159, 7
    %v161 = vsub.s32 %v158, %v160
    %v162 = vrot.slane %v148, %v161
    %v163 = vcombine.high %v155, %v155
    %v164 = vcombine.high %v162, %v162
    %v165 = vcombine.high %v145, %v145
    %v167 = vunpack.c.l.s4 1983009808
    %v168 = vunpack.c.0.s8 %v167
    %v169 = vlaneseq
    %v170 = vshrl.u32 %v169, 7
    %v171 = vsub.s32 %v168, %v170
    %v172 = vrot.slane %v145, %v171
    %v174 = vunpack.c.l.s4 1983009808
    %v175 = vunpack.c.0.s8 %v174
    %v176 = vlaneseq
    %v177 = vshrl.u32 %v176, 7
    %v178 = vsub.s32 %v175, %v177
    %v179 = vrot.slane %v165, %v178
    %v180 = vcombine.high %v172, %v172
    %vm188 = vcmask 1041408
    %v189 = vsel %vm188, %v155, 0.0
    %v190 = vsel %vm188, %v163, 0.0
    %v191 = vadd.f32 %v189, %v190
    %v192 = vsel %vm188, %v162, 0.0
    %v193 = vadd.f32 %v191, %v192
    %v194 = vsel %vm188, %v164, 0.0
    %v195 = vadd.f32 %v193, %v194
    %v196 = vsel %vm188, %v172, 0.0
    %v197 = vadd.f32 %v195, %v196
    %v198 = vsel %vm188, %v180, 0.0
    %v199 = vadd.f32 %v197, %v198
    %vm200 = vcmask 123904
    %v201 = vsel %vm200, %v179, 0.0
    %v202 = vadd.f32 %v199, %v201
    %203 = vadd.xlane.f32.xlu0 %v202
    %v204 = vpop.xlane.xlu0 %203
    %v205 = vrot.slane %v204, 4
    %v206 = vadd.f32 %v204, %v205
    %v207 = vrot.slane %v206, 2
    %v208 = vadd.f32 %v206, %v207
    %v209 = vrot.slane %v208, 1
    %v210 = vadd.f32 %v208, %v209
    %s211 = vtos %v210
    %s212 = smul.f32 %s211, 0.00012755101
    %s213 = sadd.f32 %s137, %s212
    %v214 = vlaneseq
    %v215 = vand.u32 %v214, 127
    %vm216 = vcmp.eq.s32.totalorder %v93, 0
    %vm217 = vcmp.eq.s32.totalorder %v215, 0
    %vm218 = vmand %vm216, %vm217
    %v219 = vstv %s213
    %v220 = vsel %vm218, %v219, 0.0
    %221 = vst [vmem:[#allocation2] sm:$0xff] %v220
    // Predicated region
    $region22: #{tpu_custom_call.1} parent=1 // pred_check
      _
    $region23: #{tpu_custom_call.1} parent=1 // pred_check_branch
      %223 = sbr.rel (0) target = $region25
    $region24: #{tpu_custom_call.1} parent=1 // pred_region
      %s225 = ssub.s32 128, 128
      %226 = vsyncadd [#allocation3], %s225
      %s228 = sshll.u32 [#allocation2], 4
      %s229 = int_to_ptr.vmem [resolvable:$true] %s228
      %231 = dma.vmem_to_hbm [thread:$0]  %s229, 128, %s5, [#allocation3]
    $region25: #{tpu_custom_call.1} parent=1 // pred_fallthru
      _
    // Predicated region
    $region26: #{tpu_custom_call.1} parent=1 // pred_check
      _
    $region27: #{tpu_custom_call.1} parent=1 // pred_check_branch
      %233 = sbr.rel (0) target = $region29
    $region28: #{tpu_custom_call.1} parent=1 // pred_region
      %234 = dma.done [#allocation3], 128
    $region29: #{tpu_custom_call.1} parent=1 // pred_fallthru
      _
    %235 = vsyncpa [#allocation3], 1

</llo_original>
